<compile_context>
chip_gen: v5e
topology: v5e:2x2
jax: 0.10.0
libtpu: 0.0.40
codegen_flags: <defaults>
</compile_context>

<pallas_src>
import jax
import jax.numpy as jnp
from jax.experimental import pallas as pl
from jax.experimental.pallas import tpu as pltpu


_LANE = 128
_MAX_ROW_TILE = 1024  # rows of 128 lanes per grid step (512 KiB f32 / input tile)


# ----------------------------- Pallas kernel -------------------------------

def _weighted_mse_kernel(scale_ref, pred_ref, tgt_ref, out_ref, acc_ref):
    """Grid = (batch, k).  Accumulates squared error of one sample over k tiles.

    scale_ref : (B,) f32 in SMEM  -- per-sample (weight / N)
    pred_ref  : (1, TR, 128) VMEM tile of predictions
    tgt_ref   : (1, TR, 128) VMEM tile of target noise
    out_ref   : (1, 1, 128) VMEM  -- weighted per-sample MSE (broadcast on lanes)
    acc_ref   : (TR, 128) f32 VMEM scratch accumulator
    """
    # Keep all pallas grid primitives + scalar SMEM reads OUTSIDE pl.when bodies
    # (nested-cond program_id is not lowerable on every path).
    b = pl.program_id(0)
    k = pl.program_id(1)
    nk = pl.num_programs(1)
    scale = scale_ref[b]  # scalar SMEM read (weight / N)

    @pl.when(k == 0)
    def _init():
        acc_ref[...] = jnp.zeros_like(acc_ref)

    d = pred_ref[0].astype(jnp.float32) - tgt_ref[0].astype(jnp.float32)
    acc_ref[...] += d * d  # VPU-only; cross-lane reduce deferred to finalize

    @pl.when(k == nk - 1)
    def _finalize():
        total = jnp.sum(acc_ref[...])  # one XLU reduce per sample
        out_ref[...] = jnp.full(out_ref.shape, total * scale, dtype=out_ref.dtype)


def _choose_row_tile(rows):
    """Pick a row-tile: full rows if small, else a multiple of 16 dividing rows
    (dtype-agnostic sublane alignment), else 512 with zero padding."""
    if rows <= _MAX_ROW_TILE:
        return rows
    for tr in range(_MAX_ROW_TILE, 255, -16):
        if rows % tr == 0:
            return tr
    return 512  # fallback: rows will be zero-padded up to a multiple of 512


def per_sample_weighted_mse(model_pred, target_noise, weights):
    """Returns (B,) float32: weights[b] * mean((pred[b] - target[b])**2)."""
    B = model_pred.shape[0]
    N = 1
    for d in model_pred.shape[1:]:
        N *= d

    p2 = model_pred.reshape(B, N)
    t2 = target_noise.reshape(B, N)

    rows = pl.cdiv(N, _LANE)
    tr = _choose_row_tile(rows)
    rows_pad = pl.cdiv(rows, tr) * tr
    n_pad = rows_pad * _LANE
    if n_pad != N:
        # zero padding contributes (0-0)^2 = 0 to the sum; we divide by true N
        pad = ((0, 0), (0, n_pad - N))
        p2 = jnp.pad(p2, pad)
        t2 = jnp.pad(t2, pad)

    p3 = p2.reshape(B, rows_pad, _LANE)
    t3 = t2.reshape(B, rows_pad, _LANE)
    k_steps = rows_pad // tr

    # Fold 1/N into the per-sample weight so the kernel does one scalar multiply.
    scale = weights.astype(jnp.float32) * jnp.float32(1.0 / float(N))

    out = pl.pallas_call(
        _weighted_mse_kernel,
        out_shape=jax.ShapeDtypeStruct((B, 1, _LANE), jnp.float32),
        grid=(B, k_steps),
        in_specs=[
            pl.BlockSpec(memory_space=pltpu.MemorySpace.SMEM),       # scale (B,)
            pl.BlockSpec((1, tr, _LANE), lambda b, k: (b, k, 0)),    # pred tile
            pl.BlockSpec((1, tr, _LANE), lambda b, k: (b, k, 0)),    # target tile
        ],
        out_specs=pl.BlockSpec((1, 1, _LANE), lambda b, k: (b, 0, 0)),
        scratch_shapes=[pltpu.VMEM((tr, _LANE), jnp.float32)],
        compiler_params=pltpu.CompilerParams(
            dimension_semantics=("parallel", "arbitrary")),
    )(scale, p3, t3)

    return out[:, 0, 0]


# ----------------------------- Module wrapper -------------------------------

class NoiseScheduler:
    """Minimal DDPM-style scheduler providing alphas_cumprod (deterministic)."""

    def __init__(self, num_train_timesteps=1000, beta_start=1e-4, beta_end=2e-2):
        betas = jnp.linspace(beta_start, beta_end, num_train_timesteps,
                             dtype=jnp.float32)
        alphas = 1.0 - betas
        self.alphas_cumprod = jnp.cumprod(alphas)


class MSELoss:
    def __init__(self, noise_scheduler, snr_gamma):
        self.noise_scheduler = noise_scheduler
        self.snr_gamma = snr_gamma

    def compute_snr(self, timesteps):
        alphas_cumprod = self.noise_scheduler.alphas_cumprod
        sqrt_alphas_cumprod = alphas_cumprod ** 0.5
        sqrt_one_minus_alphas_cumprod = (1.0 - alphas_cumprod) ** 0.5
        alpha = sqrt_alphas_cumprod[timesteps].astype(jnp.float32)
        sigma = sqrt_one_minus_alphas_cumprod[timesteps].astype(jnp.float32)
        snr = (alpha / sigma) ** 2
        return snr

    def __call__(self, model_pred, target_noise, timesteps):
        B = model_pred.shape[0]
        if self.snr_gamma is None:
            # F.mse_loss(reduction='mean'): equal-size samples -> global mean
            # equals the mean of per-sample means (weight = 1).
            weights = jnp.ones((B,), dtype=jnp.float32)
        else:
            snr = self.compute_snr(timesteps)
            gamma = jnp.full_like(snr, self.snr_gamma)
            weights = jnp.minimum(snr, gamma) / snr
        loss_per_sample = per_sample_weighted_mse(model_pred, target_noise, weights)
        return jnp.mean(loss_per_sample)

    # TODO(synk): forward_box_loss uses host-side int() box coords (data-dependent
    # Python slicing); not translated — only forward() is implemented here.


# --------------------------------- Demo -------------------------------------

if __name__ == "__main__":
    key = jax.random.PRNGKey(0)
    k1, k2, k3 = jax.random.split(key, 3)

    B, C, H, W = 2, 4, 16, 16
    model_pred = jax.random.normal(k1, (B, C, H, W), dtype=jnp.float32)
    target_noise = jax.random.normal(k2, (B, C, H, W), dtype=jnp.float32)
    timesteps = jax.random.randint(k3, (B,), 0, 1000, dtype=jnp.int32)

    scheduler = NoiseScheduler(num_train_timesteps=1000)

    # Min-SNR weighted branch
    loss_fn = MSELoss(scheduler, snr_gamma=5.0)
    loss = jax.block_until_ready(loss_fn(model_pred, target_noise, timesteps))

    snr = loss_fn.compute_snr(timesteps)
    w = jnp.minimum(snr, jnp.full_like(snr, 5.0)) / snr
    ref = jnp.mean(jnp.mean((model_pred - target_noise) ** 2, axis=(1, 2, 3)) * w)
    assert jnp.allclose(loss, ref, rtol=1e-5, atol=1e-6), (loss, ref)

    # snr_gamma=None branch (plain mean MSE)
    loss_fn_none = MSELoss(scheduler, snr_gamma=None)
    loss2 = jax.block_until_ready(loss_fn_none(model_pred, target_noise, timesteps))
    ref2 = jnp.mean((model_pred - target_noise) ** 2)
    assert jnp.allclose(loss2, ref2, rtol=1e-5, atol=1e-6), (loss2, ref2)

    # bf16 inputs stay narrow in HBM; kernel upcasts internally
    mp_bf = model_pred.astype(jnp.bfloat16)
    tn_bf = target_noise.astype(jnp.bfloat16)
    loss3 = jax.block_until_ready(loss_fn(mp_bf, tn_bf, timesteps))
    ref3 = jnp.mean(jnp.mean(
        (mp_bf.astype(jnp.float32) - tn_bf.astype(jnp.float32)) ** 2,
        axis=(1, 2, 3)) * w)
    assert jnp.allclose(loss3, ref3, rtol=1e-3, atol=1e-4), (loss3, ref3)

    # N not a multiple of 128 exercises the zero-padding path
    kp1, kp2 = jax.random.split(k3)
    mp_odd = jax.random.normal(kp1, (2, 3, 10, 10), dtype=jnp.float32)
    tn_odd = jax.random.normal(kp2, (2, 3, 10, 10), dtype=jnp.float32)
    loss4 = jax.block_until_ready(loss_fn_none(mp_odd, tn_odd, timesteps))
    ref4 = jnp.mean((mp_odd - tn_odd) ** 2)
    assert jnp.allclose(loss4, ref4, rtol=1e-5, atol=1e-6), (loss4, ref4)

    print("KERNEL_OK")
</pallas_src>

<mosaic_0001>
module attributes {stable_mosaic.version = 11 : i64} {
  func.func @_weighted_mse_kernel(%arg0: i32, %arg1: i32, %arg2: memref<2xf32, #tpu.memory_space<smem>>, %arg3: memref<1x8x128xf32, #tpu.memory_space<vmem>>, %arg4: memref<1x8x128xf32, #tpu.memory_space<vmem>>, %arg5: memref<1x1x128xf32, #tpu.memory_space<vmem>>, %arg6: memref<8x128xf32, #tpu.memory_space<vmem>>) attributes {dimension_semantics = [#tpu.dimension_semantics<parallel>, #tpu.dimension_semantics<arbitrary>], iteration_bounds = array<i64: 2, 1>, scalar_prefetch = 0 : i64, scratch_operands = 1 : i64, tpu.core_type = #tpu.core_type<tc>, window_params = [{transform_indices = @transform_0, window_bounds = array<i64: 2>}, {transform_indices = @transform_1, window_bounds = array<i64: 1, 8, 128>}, {transform_indices = @transform_2, window_bounds = array<i64: 1, 8, 128>}, {transform_indices = @transform_3, window_bounds = array<i64: 1, 1, 128>}]} {
    %0 = arith.index_cast %arg0 : i32 to index
    %1 = memref.load %arg2[%0] : memref<2xf32, #tpu.memory_space<smem>>
    %c0_i32 = arith.constant 0 : i32
    %2 = arith.cmpi eq, %arg1, %c0_i32 : i32
    %3 = arith.extui %2 : i1 to i32
    %c0_i32_0 = arith.constant 0 : i32
    %4 = arith.cmpi ne, %3, %c0_i32_0 : i32
    scf.if %4 {
      %cst = arith.constant 0.000000e+00 : f32
      %17 = vector.broadcast %cst : f32 to vector<8x128xf32>
      %c0_12 = arith.constant 0 : index
      %c0_13 = arith.constant 0 : index
      %18 = vector.load %arg6[%c0_12, %c0_13] : memref<8x128xf32, #tpu.memory_space<vmem>>, vector<8x128xf32>
      tpu.vector_store %arg6[%c0_12, %c0_13], %17 {strides = array<i32>} : memref<8x128xf32, #tpu.memory_space<vmem>>, vector<8x128xf32>,
    } else {
    }
    %c0 = arith.constant 0 : index
    %c0_1 = arith.constant 0 : index
    %c0_2 = arith.constant 0 : index
    %5 = vector.load %arg3[%c0, %c0_1, %c0_2] : memref<1x8x128xf32, #tpu.memory_space<vmem>>, vector<1x8x128xf32>
    %6 = vector.shape_cast %5 : vector<1x8x128xf32> to vector<8x128xf32>
    %c0_3 = arith.constant 0 : index
    %c0_4 = arith.constant 0 : index
    %c0_5 = arith.constant 0 : index
    %7 = vector.load %arg4[%c0_3, %c0_4, %c0_5] : memref<1x8x128xf32, #tpu.memory_space<vmem>>, vector<1x8x128xf32>
    %8 = vector.shape_cast %7 : vector<1x8x128xf32> to vector<8x128xf32>
    %9 = arith.subf %6, %8 : vector<8x128xf32>
    %c0_6 = arith.constant 0 : index
    %c0_7 = arith.constant 0 : index
    %10 = vector.load %arg6[%c0_6, %c0_7] : memref<8x128xf32, #tpu.memory_space<vmem>>, vector<8x128xf32>
    %11 = arith.mulf %9, %9 : vector<8x128xf32>
    %12 = arith.addf %10, %11 : vector<8x128xf32>
    %c0_8 = arith.constant 0 : index
    %c0_9 = arith.constant 0 : index
    %13 = vector.load %arg6[%c0_8, %c0_9] : memref<8x128xf32, #tpu.memory_space<vmem>>, vector<8x128xf32>
    tpu.vector_store %arg6[%c0_8, %c0_9], %12 {strides = array<i32>} : memref<8x128xf32, #tpu.memory_space<vmem>>, vector<8x128xf32>,
    %c0_i32_10 = arith.constant 0 : i32
    %14 = arith.cmpi eq, %arg1, %c0_i32_10 : i32
    %15 = arith.extui %14 : i1 to i32
    %c0_i32_11 = arith.constant 0 : i32
    %16 = arith.cmpi ne, %15, %c0_i32_11 : i32
    scf.if %16 {
      %c0_12 = arith.constant 0 : index
      %c0_13 = arith.constant 0 : index
      %17 = vector.load %arg6[%c0_12, %c0_13] : memref<8x128xf32, #tpu.memory_space<vmem>>, vector<8x128xf32>
      %18 = vector.shape_cast %17 : vector<8x128xf32> to vector<1x8x128xf32>
      %cst = arith.constant dense<0.000000e+00> : vector<1xf32>
      %19 = vector.multi_reduction <add>, %18, %cst [1, 2] : vector<1x8x128xf32> to vector<1xf32>
      %20 = vector.shape_cast %19 : vector<1xf32> to vector<1x1x1xf32>
      %21 = vector.extract %20[0, 0, 0] : f32 from vector<1x1x1xf32>
      %22 = arith.mulf %21, %1 : f32
      %23 = vector.broadcast %22 : f32 to vector<1x1x128xf32>
      %c0_14 = arith.constant 0 : index
      %c0_15 = arith.constant 0 : index
      %c0_16 = arith.constant 0 : index
      %24 = vector.load %arg5[%c0_14, %c0_15, %c0_16] : memref<1x1x128xf32, #tpu.memory_space<vmem>>, vector<1x1x128xf32>
      tpu.vector_store %arg5[%c0_14, %c0_15, %c0_16], %23 {strides = array<i32>} : memref<1x1x128xf32, #tpu.memory_space<vmem>>, vector<1x1x128xf32>,
    } else {
    }
    return
  }
  func.func @transform_0(%arg0: i32, %arg1: i32) -> i32 {
    %c0_i32 = arith.constant 0 : i32
    %c0_i32_0 = arith.constant 0 : i32
    return %c0_i32 : i32
  }
  func.func @transform_1(%arg0: i32, %arg1: i32) -> (i32, i32, i32) {
    %c0_i32 = arith.constant 0 : i32
    %c0_i32_0 = arith.constant 0 : i32
    return %arg0, %arg1, %c0_i32 : i32, i32, i32
  }
  func.func @transform_2(%arg0: i32, %arg1: i32) -> (i32, i32, i32) {
    %c0_i32 = arith.constant 0 : i32
    %c0_i32_0 = arith.constant 0 : i32
    return %arg0, %arg1, %c0_i32 : i32, i32, i32
  }
  func.func @transform_3(%arg0: i32, %arg1: i32) -> (i32, i32, i32) {
    %c0_i32 = arith.constant 0 : i32
    %c0_i32_0 = arith.constant 0 : i32
    %c0_i32_1 = arith.constant 0 : i32
    return %arg0, %c0_i32, %c0_i32_0 : i32, i32, i32
  }
}

</mosaic_0001>

<llo_original>
// kernel: tpu_custom_call.1
$region0: #{tpu_custom_call.1}
  #allocation0 [shape = 'u32[]', space=smem, size = 0x4, offset = 0x4, fixed_abs, tag = 'smem constant byte address 0x4 - core index']
  #allocation1 [shape = 'u32[72,128]{1,0:T(1,128)}', space=vmem, size = 0x9000, scoped, tag = 'internal scratch']
  #allocation2 [shape = 'f32[8,128]{1,0:T(8,128)}', space=vmem, size = 0x1000, scoped, tag = 'scratch operand']
  %s0 = inlined_call_operand.hbm [shape: f32[2], index: 0, kind: input, shape index: {}]
  %s1 = inlined_call_operand.hbm [shape: f32[2,8,128], index: 1, kind: input, shape index: {}]
  %s2 = inlined_call_operand.hbm [shape: f32[2,8,128], index: 2, kind: input, shape index: {}]
  %s3 = inlined_call_operand.hbm [shape: f32[2,1,128], index: 3, kind: output, shape index: {}]
  %s4 = sld [smem:[#allocation0]]
  $region65: #{tpu_custom_call.1} parent=0
    _
  %s6 = ssub.s32 1, %s4
  %s7 = scalar_select 0, %s6, %s4
  $region1: #{tpu_custom_call.1} parent=0
    #allocation3 [shape = 'u8[512]{0}', space=smem, size = 0x200, scoped, tag = 'input window, operand 0, single buffered']
    #allocation4 [shape = 's32[2]{0}', space=sflag, size = 0x8, scoped, tag = 'scoped memory for tpu_custom_call.1']
    #allocation5 [shape = 's32[2]{0}', space=sflag, size = 0x8, scoped, tag = 'scoped memory for tpu_custom_call.1']
    #allocation6 [shape = 's32[2]{0}', space=sflag, size = 0x8, scoped, tag = 'scoped memory for tpu_custom_call.1']
    #allocation7 [shape = 'u8[8192]{0}', space=vmem, size = 0x2000, scoped, tag = 'input window, operand 1']
    #allocation8 [shape = 'u8[8192]{0}', space=vmem, size = 0x2000, scoped, tag = 'input window, operand 2']
    #allocation9 [shape = 's32[2]{0}', space=sflag, size = 0x8, scoped, tag = 'scoped memory for tpu_custom_call.1']
    #allocation10 [shape = 'u8[1024]{0}', space=vmem, size = 0x400, scoped, tag = 'output window, operand 0']
    %8 = vsyncpa [#allocation6], 0
    %9 = vsyncpa [#allocation4], 0
    %s10 = scalar_lea.sflag [#allocation4], 1
    %11 = vsyncpa %s10, 0
    %12 = vsyncpa [#allocation9], 0
    %s13 = scalar_lea.sflag [#allocation9], 1
    %14 = vsyncpa %s13, 0
    %15 = vsyncpa [#allocation5], 0
    %s16 = scalar_lea.sflag [#allocation5], 1
    %17 = vsyncpa %s16, 0
    loop: start=0, step=1, limit=4
    $region2: #{tpu_custom_call.1} parent=1 // loop_pre_header
      _
    $region3: #{tpu_custom_call.1} parent=1 // loop_header
      %s19 = sphi 0, %s23
      %p20 = scmp.ge.s32.totalorder %s19, 4
      %s26 = sphi 0, %s38
      %s27 = sphi 0, %s34
      %s28 = sphi 0, %s26
      %s29 = sphi 0, %s27
      %s30 = sphi 0, %s28
      %s31 = sphi 0, %s29
      %s39 = sphi 0, %s39
      %s41 = sphi 0, %s39
      %s42 = sphi 0, %s41
      %s56 = sphi 0, %s42
      %s64 = sphi 0, %s66
      %s67 = sphi 0, %s64
      %s68 = sphi 0, %s67
      %s84 = sphi 0, %s68
      %s92 = sphi 0, %s94
      %s95 = sphi 0, %s92
      %s96 = sphi 0, %s95
      %s112 = sphi 0, %s96
      %s118 = sphi 0, %s120
      %s121 = sphi 0, %s118
      %s122 = sphi 0, %s121
      %s138 = sphi 0, %s122
    $region4: #{tpu_custom_call.1} parent=1 // loop_header_branch
      %22 = sbr.rel (%p20) target = $region8
    $region5: #{tpu_custom_call.1} parent=1 // loop_body
      %s24 = ssub.s32 %s19, 1
      %s25 = ssub.s32 %s19, 2
      %s32 = sadd.s32 1, %s27
      %p33 = scmp.ge.s32.totalorder %s32, 1
      %s34 = scalar_select %p33, 0, %s32
      %s35 = sadd.s32 1, %s26
      %s36 = scalar_select %p33, %s35, %s26
      %p37 = scmp.ge.s32.totalorder %s36, 2
      %s38 = scalar_select %p37, 0, %s36
      %s40 = sadd.s32 %s39, 1
      %p43 = scmp.eq.s32.totalorder %s19, 1
      %p44 = scmp.ne.s32.totalorder %s39, %s41
      %p45 = scmp.eq.s32.totalorder %s19, 0
      %p46 = por %p44, %p45
      %p47 = scmp.ne.s32.totalorder %s39, %s41
      %p48 = scmp.eq.s32.totalorder %s24, 1
      %p49 = por %p47, %p48
      %p50 = scmp.ne.s32.totalorder %s41, %s42
      %p51 = scmp.eq.s32.totalorder %s24, 0
      %p52 = por %p50, %p51
      %p53 = scmp.ne.s32.totalorder %s41, %s42
      %p54 = scmp.eq.s32.totalorder %s25, 1
      %p55 = por %p53, %p54
      %p57 = scmp.ne.s32.totalorder %s42, %s56
      %p58 = scmp.eq.s32.totalorder %s25, 0
      %p59 = por %p57, %p58
      %s60 = ssub.s32 %s26, %s38
      %s61 = ssub.s32 %s27, %s34
      %s62 = sor.u32 %s60, %s61
      %p63 = scmp.eq.s32.totalorder %s62, 0
      %s65 = sadd.s32 %s64, 1
      %s66 = scalar_select %p63, %s64, %s65
      %p69 = pneg %p63
      %p70 = scmp.eq.s32.totalorder %s19, 1
      %p71 = por %p69, %p70
      %p72 = scmp.ne.s32.totalorder %s64, %s67
      %p73 = scmp.eq.s32.totalorder %s19, 0
      %p74 = por %p72, %p73
      %p75 = scmp.ne.s32.totalorder %s64, %s67
      %p76 = scmp.eq.s32.totalorder %s24, 1
      %p77 = por %p75, %p76
      %p78 = scmp.ne.s32.totalorder %s67, %s68
      %p79 = scmp.eq.s32.totalorder %s24, 0
      %p80 = por %p78, %p79
      %p81 = scmp.ne.s32.totalorder %s67, %s68
      %p82 = scmp.eq.s32.totalorder %s25, 1
      %p83 = por %p81, %p82
      %p85 = scmp.ne.s32.totalorder %s68, %s84
      %p86 = scmp.eq.s32.totalorder %s25, 0
      %p87 = por %p85, %p86
      %s88 = ssub.s32 %s26, %s38
      %s89 = ssub.s32 %s27, %s34
      %s90 = sor.u32 %s88, %s89
      %p91 = scmp.eq.s32.totalorder %s90, 0
      %s93 = sadd.s32 %s92, 1
      %s94 = scalar_select %p91, %s92, %s93
      %p97 = pneg %p91
      %p98 = scmp.eq.s32.totalorder %s19, 1
      %p99 = por %p97, %p98
      %p100 = scmp.ne.s32.totalorder %s92, %s95
      %p101 = scmp.eq.s32.totalorder %s19, 0
      %p102 = por %p100, %p101
      %p103 = scmp.ne.s32.totalorder %s92, %s95
      %p104 = scmp.eq.s32.totalorder %s24, 1
      %p105 = por %p103, %p104
      %p106 = scmp.ne.s32.totalorder %s95, %s96
      %p107 = scmp.eq.s32.totalorder %s24, 0
      %p108 = por %p106, %p107
      %p109 = scmp.ne.s32.totalorder %s95, %s96
      %p110 = scmp.eq.s32.totalorder %s25, 1
      %p111 = por %p109, %p110
      %p113 = scmp.ne.s32.totalorder %s96, %s112
      %p114 = scmp.eq.s32.totalorder %s25, 0
      %p115 = por %p113, %p114
      %s116 = ssub.s32 %s26, %s38
      %p117 = scmp.eq.s32.totalorder %s116, 0
      %s119 = sadd.s32 %s118, 1
      %s120 = scalar_select %p117, %s118, %s119
      %p123 = pneg %p117
      %p124 = scmp.eq.s32.totalorder %s19, 1
      %p125 = por %p123, %p124
      %p126 = scmp.ne.s32.totalorder %s118, %s121
      %p127 = scmp.eq.s32.totalorder %s19, 0
      %p128 = por %p126, %p127
      %p129 = scmp.ne.s32.totalorder %s118, %s121
      %p130 = scmp.eq.s32.totalorder %s24, 1
      %p131 = por %p129, %p130
      %p132 = scmp.ne.s32.totalorder %s121, %s122
      %p133 = scmp.eq.s32.totalorder %s24, 0
      %p134 = por %p132, %p133
      %p135 = scmp.ne.s32.totalorder %s121, %s122
      %p136 = scmp.eq.s32.totalorder %s25, 1
      %p137 = por %p135, %p136
      %p139 = scmp.ne.s32.totalorder %s122, %s138
      %p140 = scmp.eq.s32.totalorder %s25, 0
      %p141 = por %p139, %p140
      %p142 = scmp.le.s32.totalorder 1, %s19
      %p143 = scmp.lt.s32.totalorder %s19, 3
      %p144 = pnand %p142, %p143
      %p145 = pneg %p144
      // Predicated region
      $region9: #{tpu_custom_call.1} parent=5 // pred_check
        _
      $region10: #{tpu_custom_call.1} parent=5 // pred_check_branch
        %147 = sbr.rel (%p144) target = $region12
      $region11: #{tpu_custom_call.1} parent=5 // pred_region
        %s148 = ssub.s32 %s19, 1
        // Predicated region
        $region13: #{tpu_custom_call.1} parent=11 // pred_check
          %p149 = pneg %p52
        $region14: #{tpu_custom_call.1} parent=11 // pred_check_branch
          %151 = sbr.rel (%p149) target = $region16
        $region15: #{tpu_custom_call.1} parent=11 // pred_region
          %153 = vsyncadd [#allocation6], 0
          %s155 = sshll.u32 %s0, 4
          %s156 = int_to_ptr.hbm [resolvable:$true] %s155
          %158 = dma.hbm_to_smem %s156, 16, [#allocation3], [#allocation6]
        $region16: #{tpu_custom_call.1} parent=11 // pred_fallthru
          _
      $region12: #{tpu_custom_call.1} parent=5 // pred_fallthru
        _
      %p159 = scmp.lt.s32.totalorder %s19, 2
      // Predicated region
      $region17: #{tpu_custom_call.1} parent=5 // pred_check
        %p160 = pneg %p159
      $region18: #{tpu_custom_call.1} parent=5 // pred_check_branch
        %162 = sbr.rel (%p160) target = $region20
      $region19: #{tpu_custom_call.1} parent=5 // pred_region
        // Predicated region
        $region21: #{tpu_custom_call.1} parent=19 // pred_check
          %p163 = pneg %p74
        $region22: #{tpu_custom_call.1} parent=19 // pred_check_branch
          %165 = sbr.rel (%p163) target = $region24
        $region23: #{tpu_custom_call.1} parent=19 // pred_region
          %s166 = sand.u32 %s64, 1
          %s167 = scalar_lea.sflag [#allocation4], %s166
          %s168 = sand.u32 %s64, 1
          %s169 = smul.addr %s168, 8
          %s170 = scalar_lea.vmem [#allocation7], %s169
          %172 = vsyncadd %s167, 0
          %s173 = sadd.s32 %s27, %s26
          %s174 = smul.addr %s173, 8
          %s175 = scalar_lea.hbm %s1, %s174
          %s177 = sshll.u32 %s175, 4
          %s178 = int_to_ptr.hbm [resolvable:$true] %s177
          %s179 = sshll.u32 %s170, 4
          %s180 = int_to_ptr.vmem [resolvable:$true] %s179
          %182 = dma.hbm_to_vmem [thread:$0]  %s178, 128, %s180, %s167
        $region24: #{tpu_custom_call.1} parent=19 // pred_fallthru
          _
        // Predicated region
        $region25: #{tpu_custom_call.1} parent=19 // pred_check
          %p183 = pneg %p102
        $region26: #{tpu_custom_call.1} parent=19 // pred_check_branch
          %185 = sbr.rel (%p183) target = $region28
        $region27: #{tpu_custom_call.1} parent=19 // pred_region
          %s186 = sand.u32 %s92, 1
          %s187 = scalar_lea.sflag [#allocation9], %s186
          %s188 = sand.u32 %s92, 1
          %s189 = smul.addr %s188, 8
          %s190 = scalar_lea.vmem [#allocation8], %s189
          %192 = vsyncadd %s187, 0
          %s193 = sadd.s32 %s27, %s26
          %s194 = smul.addr %s193, 8
          %s195 = scalar_lea.hbm %s2, %s194
          %s197 = sshll.u32 %s195, 4
          %s198 = int_to_ptr.hbm [resolvable:$true] %s197
          %s199 = sshll.u32 %s190, 4
          %s200 = int_to_ptr.vmem [resolvable:$true] %s199
          %202 = dma.hbm_to_vmem [thread:$0]  %s198, 128, %s200, %s187
        $region28: #{tpu_custom_call.1} parent=19 // pred_fallthru
          _
      $region20: #{tpu_custom_call.1} parent=5 // pred_fallthru
        _
      %p203 = scmp.le.s32.totalorder 1, %s19
      %p204 = scmp.lt.s32.totalorder %s19, 3
      %p205 = pnand %p203, %p204
      %p206 = pneg %p205
      // Predicated region
      $region29: #{tpu_custom_call.1} parent=5 // pred_check
        _
      $region30: #{tpu_custom_call.1} parent=5 // pred_check_branch
        %208 = sbr.rel (%p205) target = $region32
      $region31: #{tpu_custom_call.1} parent=5 // pred_region
        %s209 = ssub.s32 %s19, 1
        // Predicated region
        $region33: #{tpu_custom_call.1} parent=31 // pred_check
          %p210 = pneg %p52
        $region34: #{tpu_custom_call.1} parent=31 // pred_check_branch
          %212 = sbr.rel (%p210) target = $region36
        $region35: #{tpu_custom_call.1} parent=31 // pred_region
          %214 = dma.done [#allocation6], 16
        $region36: #{tpu_custom_call.1} parent=31 // pred_fallthru
          _
        %s215 = sand.u32 %s67, 1
        %s216 = scalar_lea.sflag [#allocation4], %s215
        %s217 = sand.u32 %s67, 1
        %s218 = smul.addr %s217, 8
        %s219 = scalar_lea.vmem [#allocation7], %s218
        // Predicated region
        $region37: #{tpu_custom_call.1} parent=31 // pred_check
          %p220 = pneg %p80
        $region38: #{tpu_custom_call.1} parent=31 // pred_check_branch
          %222 = sbr.rel (%p220) target = $region40
        $region39: #{tpu_custom_call.1} parent=31 // pred_region
          %224 = dma.done %s216, 128
        $region40: #{tpu_custom_call.1} parent=31 // pred_fallthru
          _
        %s225 = sand.u32 %s95, 1
        %s226 = scalar_lea.sflag [#allocation9], %s225
        %s227 = sand.u32 %s95, 1
        %s228 = smul.addr %s227, 8
        %s229 = scalar_lea.vmem [#allocation8], %s228
        // Predicated region
        $region41: #{tpu_custom_call.1} parent=31 // pred_check
          %p230 = pneg %p108
        $region42: #{tpu_custom_call.1} parent=31 // pred_check_branch
          %232 = sbr.rel (%p230) target = $region44
        $region43: #{tpu_custom_call.1} parent=31 // pred_region
          %234 = dma.done %s226, 128
        $region44: #{tpu_custom_call.1} parent=31 // pred_fallthru
          _
        %235 = sfence
        %p236 = pneg %p52
        %p237 = pneg %p49
        %s238 = sand.u32 %s67, 1
        %s239 = scalar_lea.sflag [#allocation4], %s238
        %s240 = sand.u32 %s67, 1
        %s241 = smul.addr %s240, 8
        %s242 = scalar_lea.vmem [#allocation7], %s241
        %p243 = pneg %p80
        %p244 = pneg %p77
        %s245 = sand.u32 %s95, 1
        %s246 = scalar_lea.sflag [#allocation9], %s245
        %s247 = sand.u32 %s95, 1
        %s248 = smul.addr %s247, 8
        %s249 = scalar_lea.vmem [#allocation8], %s248
        %p250 = pneg %p108
        %p251 = pneg %p105
        %p252 = pneg %p134
        %p253 = pneg %p131
        %s254 = sand.u32 %s121, 1
        %s255 = scalar_lea.sflag [#allocation5], %s254
        %s256 = sand.u32 %s121, 1
        %s257 = scalar_lea.vmem [#allocation10], %s256
        %s258 = sld [smem:[#allocation3 + %s28]]
        %p259 = scmp.eq.s32.totalorder %s29, 0
        // Predicated region
        $region45: #{tpu_custom_call.1} parent=31 // pred_check
          %p260 = pneg %p259
        $region46: #{tpu_custom_call.1} parent=31 // pred_check_branch
          %262 = sbr.rel (%p260) target = $region48
        $region47: #{tpu_custom_call.1} parent=31 // pred_region
          %263 = vst [vmem:[#allocation2] sm:$0xff] 0.0
        $region48: #{tpu_custom_call.1} parent=31 // pred_fallthru
          _
        %v264 = vld [vmem:[%s219] sm:$0xff]
        %v265 = vld [vmem:[%s229] sm:$0xff]
        %v266 = vsub.f32 %v264, %v265
        %v267 = vld [vmem:[#allocation2] sm:$0xff]
        %v268 = vmul.f32 %v266, %v266
        %v269 = vadd.f32 %v267, %v268
        %270 = vst [vmem:[#allocation2] sm:$0xff] %v269
        // Predicated region
        $region49: #{tpu_custom_call.1} parent=31 // pred_check
          %p271 = pneg %p259
        $region50: #{tpu_custom_call.1} parent=31 // pred_check_branch
          %273 = sbr.rel (%p271) target = $region52
        $region51: #{tpu_custom_call.1} parent=31 // pred_region
          %v274 = vld [vmem:[#allocation2] sm:$0xff]
          %275 = vadd.xlane.f32.xlu0 %v274
          %v276 = vpop.xlane.xlu0 %275
          %v277 = vrot.slane %v276, 4
          %v278 = vadd.f32 %v276, %v277
          %v279 = vrot.slane %v278, 2
          %v280 = vadd.f32 %v278, %v279
          %v281 = vrot.slane %v280, 1
          %v282 = vadd.f32 %v280, %v281
          %s283 = vtos %v282
          %s284 = smul.f32 %s283, %s258
          %v285 = vstv %s284
          %286 = vst [vmem:[%s257] sm:$0x1] %v285
        $region52: #{tpu_custom_call.1} parent=31 // pred_fallthru
          _
        %s287 = sand.u32 %s121, 1
        %s288 = scalar_lea.sflag [#allocation5], %s287
        %s289 = sand.u32 %s121, 1
        %s290 = scalar_lea.vmem [#allocation10], %s289
        // Predicated region
        $region53: #{tpu_custom_call.1} parent=31 // pred_check
          %p291 = pneg %p131
        $region54: #{tpu_custom_call.1} parent=31 // pred_check_branch
          %293 = sbr.rel (%p291) target = $region56
        $region55: #{tpu_custom_call.1} parent=31 // pred_region
          %295 = vsyncadd %s288, 0
          %s296 = scalar_lea.hbm %s3, %s28
          %s298 = sshll.u32 %s290, 4
          %s299 = int_to_ptr.vmem [resolvable:$true] %s298
          %s300 = sshll.u32 %s296, 4
          %s301 = int_to_ptr.hbm [resolvable:$true] %s300
          %303 = dma.vmem_to_hbm [thread:$0]  %s299, 16, %s301, %s288
        $region56: #{tpu_custom_call.1} parent=31 // pred_fallthru
          _
      $region32: #{tpu_custom_call.1} parent=5 // pred_fallthru
        _
      %p304 = scmp.le.s32.totalorder 2, %s19
      // Predicated region
      $region57: #{tpu_custom_call.1} parent=5 // pred_check
        %p305 = pneg %p304
      $region58: #{tpu_custom_call.1} parent=5 // pred_check_branch
        %307 = sbr.rel (%p305) target = $region60
      $region59: #{tpu_custom_call.1} parent=5 // pred_region
        %s308 = ssub.s32 %s19, 2
        // Predicated region
        $region61: #{tpu_custom_call.1} parent=59 // pred_check
          %p309 = pneg %p137
        $region62: #{tpu_custom_call.1} parent=59 // pred_check_branch
          %311 = sbr.rel (%p309) target = $region64
        $region63: #{tpu_custom_call.1} parent=59 // pred_region
          %s312 = sand.u32 %s122, 1
          %s313 = scalar_lea.sflag [#allocation5], %s312
          %s314 = sand.u32 %s122, 1
          %s315 = scalar_lea.vmem [#allocation10], %s314
          %317 = dma.done %s313, 16
        $region64: #{tpu_custom_call.1} parent=59 // pred_fallthru
          _
      $region60: #{tpu_custom_call.1} parent=5 // pred_fallthru
        _
    $region6: #{tpu_custom_call.1} parent=1 // loop_footer
      %s23 = sadd.s32 1, %s19
    $region7: #{tpu_custom_call.1} parent=1 // loop_footer_branch
      %18 = sbr.rel target = $region3
    $region8: #{tpu_custom_call.1} parent=1 // loop_exit
      _
    %318 = vsyncpa [#allocation4], 1
    %s319 = scalar_lea.sflag [#allocation4], 1
    %320 = vsyncpa %s319, 1
    %321 = vsyncpa [#allocation9], 1
    %s322 = scalar_lea.sflag [#allocation9], 1
    %323 = vsyncpa %s322, 1
    %324 = vsyncpa [#allocation5], 1
    %s325 = scalar_lea.sflag [#allocation5], 1
    %326 = vsyncpa %s325, 1
    %327 = vsyncpa [#allocation6], 1
    %s328 = scalar_lea.sflag [#allocation6], 1
    %329 = vsyncpa %s328, 1

</llo_original>
